<compile_context>
chip_gen: v5e
topology: v5e:2x2
jax: 0.10.0
libtpu: 0.0.40
codegen_flags: <defaults>
</compile_context>

<pallas_src>
import numpy as np
import jax
import jax.numpy as jnp
from jax.experimental import pallas as pl
from jax.experimental.pallas import tpu as pltpu

_LN_EPS = 1e-5                      # torch.nn.LayerNorm default
_GELU_C = 0.7978845608028654        # sqrt(2/pi)


def _gelu(x):
    # tanh-approximate GELU (goes to the EUP tanh slot); |err| vs torch's
    # exact erf GELU < ~1e-3, well inside the test tolerance.
    return 0.5 * x * (1.0 + jnp.tanh(_GELU_C * (x + 0.044715 * x * x * x)))


# ----------------------------------------------------------------------------
# Pallas kernels
# ----------------------------------------------------------------------------
def _embed_kernel(x_ref, w_ref, b_ref, o_ref):
    x = x_ref[...].astype(jnp.bfloat16)
    o_ref[...] = (jnp.dot(x, w_ref[...], preferred_element_type=jnp.float32)
                  + b_ref[...]).astype(o_ref.dtype)


def _make_mixer_stack_kernel(batch_tile, num_patches):
    Bt, N = batch_tile, num_patches

    def kernel(x_ref, g_ref, beta_ref,
               w1aT_ref, b1a_ref, w1bT_ref, b1b_ref,
               w2a_ref, b2a_ref, w2b_ref, b2b_ref,
               o_ref, tok_ref):
        d = pl.program_id(1)

        # load tokens into the VMEM-resident accumulator on the first layer
        @pl.when(d == 0)
        def _load_tokens():
            tok_ref[...] = x_ref[...].astype(jnp.float32)

        g = g_ref[0]          # (1, D) f32
        beta = beta_ref[0]    # (1, D) f32

        def ln(v):            # LayerNorm over D (params shared by both pre-norms)
            mu = jnp.mean(v, axis=-1, keepdims=True)
            var = jnp.mean(jnp.square(v - mu), axis=-1, keepdims=True)
            return (v - mu) * jax.lax.rsqrt(var + _LN_EPS) * g + beta

        # ---- token-mixing MLP: weights pre-transposed, D stays on lanes ----
        w1aT = w1aT_ref[0]    # (EN, N) bf16  (torch (out, in) layout)
        b1a = b1a_ref[0]      # (EN, 1) f32
        w1bT = w1bT_ref[0]    # (N, EN) bf16
        b1b = b1b_ref[0]      # (N, 1) f32
        for bi in range(Bt):  # static unroll over the batch tile
            rows = pl.ds(bi * N, N)
            xb = tok_ref[rows, :]                                      # (N, D)
            xn = ln(xb).astype(jnp.bfloat16)
            h = jnp.dot(w1aT, xn, preferred_element_type=jnp.float32) + b1a
            h = _gelu(h).astype(jnp.bfloat16)                          # (EN, D)
            t2 = jnp.dot(w1bT, h, preferred_element_type=jnp.float32) + b1b
            tok_ref[rows, :] = t2 + xb                                 # residual

        # ---- channel-mixing MLP on all Bt*N rows at once (fills the MXU) ----
        w2a = w2a_ref[0]      # (D, ED) bf16
        b2a = b2a_ref[0]      # (1, ED) f32
        w2b = w2b_ref[0]      # (ED, D) bf16
        b2b = b2b_ref[0]      # (1, D) f32
        x1 = tok_ref[...]                                              # (Bt*N, D)
        xn2 = ln(x1).astype(jnp.bfloat16)
        h2 = jnp.dot(xn2, w2a, preferred_element_type=jnp.float32) + b2a
        h2 = _gelu(h2).astype(jnp.bfloat16)                            # (Bt*N, ED)
        y = jnp.dot(h2, w2b, preferred_element_type=jnp.float32) + b2b
        tok_ref[...] = y + x1                                          # residual

        # write back to HBM only after the last layer
        @pl.when(d == pl.num_programs(1) - 1)
        def _store_tokens():
            o_ref[...] = tok_ref[...].astype(o_ref.dtype)

    return kernel


def _head_kernel(x_ref, w_ref, b_ref, o_ref):
    # AdaptiveAvgPool1d(1) over the feature dim D, then Linear(N, num_classes)
    pooled = jnp.mean(x_ref[...], axis=-1)                             # (B, N)
    o_ref[...] = (jnp.dot(pooled.astype(jnp.bfloat16), w_ref[...],
                          preferred_element_type=jnp.float32)
                  + b_ref[...]).astype(o_ref.dtype)


# ----------------------------------------------------------------------------
# pallas_call wrappers
# ----------------------------------------------------------------------------
def _embed(x2d, w, b, tm=256):
    M, P = x2d.shape
    D = w.shape[1]
    tm = min(tm, M)
    return pl.pallas_call(
        _embed_kernel,
        out_shape=jax.ShapeDtypeStruct((M, D), jnp.float32),
        grid=(pl.cdiv(M, tm),),
        in_specs=[
            pl.BlockSpec((tm, P), lambda i: (i, 0)),
            pl.BlockSpec((P, D), lambda i: (0, 0)),
            pl.BlockSpec((1, D), lambda i: (0, 0)),
        ],
        out_specs=pl.BlockSpec((tm, D), lambda i: (i, 0)),
        compiler_params=pltpu.CompilerParams(
            dimension_semantics=("parallel",)),
    )(x2d, w, b)


def _pick_batch_tile(B, N, D, row_target=256, bytes_cap=4 << 20, max_bt=16):
    """Largest small divisor of B such that Bt*N gives decent MXU row fill."""
    best = 1
    for cand in range(1, B + 1):
        if cand > max_bt:
            break
        if B % cand != 0:
            continue
        if cand * N * D * 4 > bytes_cap:
            break
        best = cand
        if cand * N >= row_target:
            break
    return best


def _mixer_stack(tok, num_patches, params):
    M, D = tok.shape
    N = num_patches
    B = M // N
    (g, beta, w1aT, b1a, w1bT, b1b, w2a, b2a, w2b, b2b) = params
    depth = g.shape[0]
    EN = w1aT.shape[1]
    ED = w2a.shape[2]

    Bt = _pick_batch_tile(B, N, D)
    rows = Bt * N

    # VMEM budget: token block (in/out/scratch) + double-buffered layer weights.
    tok_bytes = rows * D * 4
    wt_bytes = 2 * (2 * EN * N + 2 * D * ED)              # bf16 weights / layer
    bias_bytes = 4 * (EN + N + ED + 3 * D)                # f32 biases + LN params
    est = 5 * tok_bytes + 2 * (wt_bytes + bias_bytes)
    vmem_limit = int(min(64 << 20, max(32 << 20, 4 * est)))

    def wspec(shape):
        return pl.BlockSpec(shape, lambda b, d: (d, 0, 0))

    kernel = _make_mixer_stack_kernel(Bt, N)
    return pl.pallas_call(
        kernel,
        out_shape=jax.ShapeDtypeStruct((M, D), jnp.float32),
        grid=(B // Bt, depth),
        in_specs=[
            pl.BlockSpec((rows, D), lambda b, d: (b, 0)),
            wspec((1, 1, D)), wspec((1, 1, D)),
            wspec((1, EN, N)), wspec((1, EN, 1)),
            wspec((1, N, EN)), wspec((1, N, 1)),
            wspec((1, D, ED)), wspec((1, 1, ED)),
            wspec((1, ED, D)), wspec((1, 1, D)),
        ],
        out_specs=pl.BlockSpec((rows, D), lambda b, d: (b, 0)),
        scratch_shapes=[pltpu.VMEM((rows, D), jnp.float32)],
        compiler_params=pltpu.CompilerParams(
            dimension_semantics=("parallel", "arbitrary"),
            vmem_limit_bytes=vmem_limit),
    )(tok, g, beta, w1aT, b1a, w1bT, b1b, w2a, b2a, w2b, b2b)


def _head(x3d, w, b):
    B = x3d.shape[0]
    C = w.shape[1]
    return pl.pallas_call(
        _head_kernel,
        out_shape=jax.ShapeDtypeStruct((B, C), jnp.float32),
    )(x3d, w, b)


# ----------------------------------------------------------------------------
# Model (parameter container + forward)
# ----------------------------------------------------------------------------
def _uniform(key, shape, bound, dtype):
    # mirrors torch.nn.Linear default init: U(-1/sqrt(fan_in), 1/sqrt(fan_in))
    return jax.random.uniform(key, shape, jnp.float32, -bound, bound).astype(dtype)


class MLPMixerPallas:
    def __init__(self, key, image_size, channels, patch_size, depth,
                 num_classes, dim, expansion_factor=4, dropout=0.0):
        # dropout=0.0 -> nn.Dropout is the identity; no randomness needed.
        ih, iw = (image_size if isinstance(image_size, tuple)
                  else (image_size, image_size))
        self.patch_size = patch_size
        self.dim = dim
        self.depth = depth
        self.num_patchs = (ih // patch_size) * (iw // patch_size)
        N, D, E = self.num_patchs, dim, expansion_factor
        EN, ED = E * N, E * D
        P = patch_size * patch_size * channels
        bf = jnp.bfloat16

        keys = jax.random.split(key, 4 + max(depth, 1))
        self.w_emb = _uniform(keys[0], (P, D), 1.0 / np.sqrt(P), bf)
        self.b_emb = _uniform(keys[1], (1, D), 1.0 / np.sqrt(P), jnp.float32)
        self.w_final = _uniform(keys[2], (N, num_classes), 1.0 / np.sqrt(N), bf)
        self.b_final = _uniform(keys[3], (1, num_classes), 1.0 / np.sqrt(N),
                                jnp.float32)

        gs, bts = [], []
        w1aTs, b1as, w1bTs, b1bs = [], [], [], []
        w2as, b2as, w2bs, b2bs = [], [], [], []
        for d in range(depth):
            bk = jax.random.split(keys[4 + d], 8)
            # one shared LayerNorm per block (reused by both pre-norms, like
            # the PyTorch MixerBlock reusing self.norm)
            gs.append(jnp.ones((1, D), jnp.float32))
            bts.append(jnp.zeros((1, D), jnp.float32))
            bn, ben = 1.0 / np.sqrt(N), 1.0 / np.sqrt(EN)
            bd, bed = 1.0 / np.sqrt(D), 1.0 / np.sqrt(ED)
            # token MLP weights kept in torch (out, in) layout == pre-transposed
            w1aTs.append(_uniform(bk[0], (EN, N), bn, bf))
            b1as.append(_uniform(bk[1], (EN, 1), bn, jnp.float32))
            w1bTs.append(_uniform(bk[2], (N, EN), ben, bf))
            b1bs.append(_uniform(bk[3], (N, 1), ben, jnp.float32))
            # channel MLP weights stored (in, out)
            w2as.append(_uniform(bk[4], (D, ED), bd, bf))
            b2as.append(_uniform(bk[5], (1, ED), bd, jnp.float32))
            w2bs.append(_uniform(bk[6], (ED, D), bed, bf))
            b2bs.append(_uniform(bk[7], (1, D), bed, jnp.float32))

        if depth > 0:
            st = lambda xs: jnp.stack(xs, axis=0)
            self.g, self.beta = st(gs), st(bts)
            self.w1aT, self.b1a = st(w1aTs), st(b1as)
            self.w1bT, self.b1b = st(w1bTs), st(b1bs)
            self.w2a, self.b2a = st(w2as), st(b2as)
            self.w2b, self.b2b = st(w2bs), st(b2bs)

    def _rearrange(self, x):
        # 'b c (h p1) (w p2) -> b (h w) (p1 p2 c)'
        B, C, H, W = x.shape
        p = self.patch_size
        h, w = H // p, W // p
        xr = x.reshape(B, C, h, p, w, p).transpose(0, 2, 4, 3, 5, 1)
        return xr.reshape(B, h * w, p * p * C)

    def forward(self, x):
        B = x.shape[0]
        xr = self._rearrange(x)                                   # (B, N, P)
        N, P = xr.shape[1], xr.shape[2]
        tok = _embed(xr.reshape(B * N, P), self.w_emb, self.b_emb)  # (B*N, D)
        if self.depth > 0:
            tok = _mixer_stack(tok, N, (self.g, self.beta,
                                        self.w1aT, self.b1a,
                                        self.w1bT, self.b1b,
                                        self.w2a, self.b2a,
                                        self.w2b, self.b2b))
        return _head(tok.reshape(B, N, self.dim), self.w_final, self.b_final)

    # pure-JAX reference performing the same math (bf16 matmul operands,
    # f32 accumulation, f32 LN/GELU) for a sanity check.
    def reference(self, x):
        bf = jnp.bfloat16
        xr = self._rearrange(x)
        t = jnp.matmul(xr.astype(bf), self.w_emb,
                       preferred_element_type=jnp.float32) + self.b_emb
        for d in range(self.depth):
            g, beta = self.g[d], self.beta[d]

            def ln(v):
                mu = v.mean(-1, keepdims=True)
                var = jnp.square(v - mu).mean(-1, keepdims=True)
                return (v - mu) * jax.lax.rsqrt(var + _LN_EPS) * g + beta

            xn = ln(t)
            h = _gelu(jnp.einsum('en,bnd->bed', self.w1aT[d], xn.astype(bf),
                                 preferred_element_type=jnp.float32)
                      + self.b1a[d])
            t2 = jnp.einsum('ne,bed->bnd', self.w1bT[d], h.astype(bf),
                            preferred_element_type=jnp.float32) + self.b1b[d]
            x1 = t2 + t
            h2 = _gelu(jnp.matmul(ln(x1).astype(bf), self.w2a[d],
                                  preferred_element_type=jnp.float32)
                       + self.b2a[d])
            t = jnp.matmul(h2.astype(bf), self.w2b[d],
                           preferred_element_type=jnp.float32) + self.b2b[d] + x1
        pooled = t.mean(-1)                                           # (B, N)
        return jnp.matmul(pooled.astype(bf), self.w_final,
                          preferred_element_type=jnp.float32) + self.b_final


if __name__ == "__main__":
    key = jax.random.PRNGKey(0)
    k_param, k_input = jax.random.split(key)

    # small config consistent with the PyTorch module
    B, C, IMG, PATCH = 2, 4, 16, 4
    DEPTH, NUM_CLASSES, DIM, EXP = 2, 8, 32, 4

    model = MLPMixerPallas(k_param, image_size=IMG, channels=C,
                           patch_size=PATCH, depth=DEPTH,
                           num_classes=NUM_CLASSES, dim=DIM,
                           expansion_factor=EXP, dropout=0.0)

    x = jax.random.normal(k_input, (B, C, IMG, IMG), jnp.float32)

    out = jax.block_until_ready(model.forward(x))
    ref = jax.block_until_ready(model.reference(x))

    assert out.shape == (B, NUM_CLASSES)
    assert bool(jnp.all(jnp.isfinite(out)))
    assert bool(jnp.allclose(out, ref, atol=2e-2, rtol=2e-2)), (
        f"mismatch: max abs diff {float(jnp.max(jnp.abs(out - ref)))}")

    print("KERNEL_OK")
</pallas_src>

<mosaic_0001>
module attributes {stable_mosaic.version = 11 : i64} {
  func.func @_embed_kernel(%arg0: i32, %arg1: memref<32x64xf32, #tpu.memory_space<vmem>>, %arg2: memref<64x32xbf16, #tpu.memory_space<vmem>>, %arg3: memref<1x32xf32, #tpu.memory_space<vmem>>, %arg4: memref<32x32xf32, #tpu.memory_space<vmem>>) attributes {dimension_semantics = [#tpu.dimension_semantics<parallel>], iteration_bounds = array<i64: 1>, scalar_prefetch = 0 : i64, scratch_operands = 0 : i64, tpu.core_type = #tpu.core_type<tc>, window_params = [{transform_indices = @transform_0, window_bounds = array<i64: 32, 64>}, {pipeline_mode = #tpu.pipeline_mode<synchronous>, transform_indices = @transform_1, window_bounds = array<i64: 64, 32>}, {pipeline_mode = #tpu.pipeline_mode<synchronous>, transform_indices = @transform_2, window_bounds = array<i64: 1, 32>}, {transform_indices = @transform_3, window_bounds = array<i64: 32, 32>}]} {
    %c0 = arith.constant 0 : index
    %c0_0 = arith.constant 0 : index
    %0 = vector.load %arg1[%c0, %c0_0] : memref<32x64xf32, #tpu.memory_space<vmem>>, vector<32x64xf32>
    %1 = arith.truncf %0 : vector<32x64xf32> to vector<32x64xbf16>
    %c0_1 = arith.constant 0 : index
    %c0_2 = arith.constant 0 : index
    %2 = vector.load %arg2[%c0_1, %c0_2] : memref<64x32xbf16, #tpu.memory_space<vmem>>, vector<64x32xbf16>
    %cst = arith.constant dense<0.000000e+00> : vector<32x32xf32>
    %3 = tpu.matmul %1, %2, %cst {dimension_numbers = #tpu.dot_dimension_numbers<[1], [0], [0], [1], [0, 0, 1, 1], [], []>} : vector<32x64xbf16>, vector<64x32xbf16>, vector<32x32xf32> -> vector<32x32xf32>
    %c0_3 = arith.constant 0 : index
    %c0_4 = arith.constant 0 : index
    %4 = vector.load %arg3[%c0_3, %c0_4] : memref<1x32xf32, #tpu.memory_space<vmem>>, vector<1x32xf32>
    %5 = vector.broadcast %4 : vector<1x32xf32> to vector<32x32xf32>
    %6 = arith.addf %3, %5 : vector<32x32xf32>
    %c0_5 = arith.constant 0 : index
    %c0_6 = arith.constant 0 : index
    %7 = vector.load %arg4[%c0_5, %c0_6] : memref<32x32xf32, #tpu.memory_space<vmem>>, vector<32x32xf32>
    tpu.vector_store %arg4[%c0_5, %c0_6], %6 {strides = array<i32>} : memref<32x32xf32, #tpu.memory_space<vmem>>, vector<32x32xf32>,
    return
  }
  func.func @transform_0(%arg0: i32) -> (i32, i32) {
    %c0_i32 = arith.constant 0 : i32
    %c0_i32_0 = arith.constant 0 : i32
    return %arg0, %c0_i32 : i32, i32
  }
  func.func @transform_1(%arg0: i32) -> (i32, i32) {
    %c0_i32 = arith.constant 0 : i32
    %c0_i32_0 = arith.constant 0 : i32
    %c0_i32_1 = arith.constant 0 : i32
    return %c0_i32, %c0_i32_0 : i32, i32
  }
  func.func @transform_2(%arg0: i32) -> (i32, i32) {
    %c0_i32 = arith.constant 0 : i32
    %c0_i32_0 = arith.constant 0 : i32
    %c0_i32_1 = arith.constant 0 : i32
    return %c0_i32, %c0_i32_0 : i32, i32
  }
  func.func @transform_3(%arg0: i32) -> (i32, i32) {
    %c0_i32 = arith.constant 0 : i32
    %c0_i32_0 = arith.constant 0 : i32
    return %arg0, %c0_i32 : i32, i32
  }
}

</mosaic_0001>

<llo_original>
// kernel: tpu_custom_call.1
$region0: #{tpu_custom_call.1}
  #allocation0 [shape = 'u32[]', space=smem, size = 0x4, offset = 0x4, fixed_abs, tag = 'smem constant byte address 0x4 - core index']
  #allocation1 [shape = 'u32[72,128]{1,0:T(1,128)}', space=vmem, size = 0x9000, scoped, tag = 'internal scratch']
  %s0 = inlined_call_operand.vmem [shape: f32[32,64], index: 0, kind: input, shape index: {}]
  %s1 = inlined_call_operand.vmem [shape: bf16[64,32], index: 1, kind: input, shape index: {}]
  %s2 = inlined_call_operand.vmem [shape: f32[1,32], index: 2, kind: input, shape index: {}]
  %s3 = inlined_call_operand.hbm [shape: f32[32,32], index: 3, kind: output, shape index: {}]
  %s4 = sld [smem:[#allocation0]]
  $region22: #{tpu_custom_call.1} parent=0
    _
  %s6 = ssub.s32 1, %s4
  %s7 = scalar_select 0, %s6, %s4
  $region1: #{tpu_custom_call.1} parent=0
    #allocation2 [shape = 'u8[16384]{0}', space=vmem, size = 0x4000, scoped, tag = 'output window, operand 0, single buffered']
    #allocation3 [shape = 's32[1]{0}', space=sflag, size = 0x4, scoped, tag = 'scoped memory for tpu_custom_call.1']
    %8 = vsyncpa [#allocation3], 0
    // Predicated region
    $region2: #{tpu_custom_call.1} parent=1 // pred_check
      _
    $region3: #{tpu_custom_call.1} parent=1 // pred_check_branch
      %10 = sbr.rel (0) target = $region5
    $region4: #{tpu_custom_call.1} parent=1 // pred_region
      _
    $region5: #{tpu_custom_call.1} parent=1 // pred_fallthru
      _
    // Predicated region
    $region6: #{tpu_custom_call.1} parent=1 // pred_check
      _
    $region7: #{tpu_custom_call.1} parent=1 // pred_check_branch
      %12 = sbr.rel (0) target = $region9
    $region8: #{tpu_custom_call.1} parent=1 // pred_region
      _
    $region9: #{tpu_custom_call.1} parent=1 // pred_fallthru
      _
    // Predicated region
    $region10: #{tpu_custom_call.1} parent=1 // pred_check
      _
    $region11: #{tpu_custom_call.1} parent=1 // pred_check_branch
      %14 = sbr.rel (0) target = $region13
    $region12: #{tpu_custom_call.1} parent=1 // pred_region
      _
    $region13: #{tpu_custom_call.1} parent=1 // pred_fallthru
      _
    %v16 = vld [vmem:[%s0] sm:$0xff]
    %v17 = vld [vmem:[%s0 + $0x8] sm:$0xff]
    %v18 = vld [vmem:[%s0 + $0x10] sm:$0xff]
    %v19 = vld [vmem:[%s0 + $0x18] sm:$0xff]
    %v20 = vpack.c.bf16 %v17, %v16
    %v21 = vpack.c.bf16 %v19, %v18
    %v22 = vld [vmem:[%s1] sm:$0xf]
    %v23 = vld [vmem:[%s1 + $0x4] sm:$0xf]
    %v24 = vld [vmem:[%s1 + $0x8] sm:$0xf]
    %v25 = vld [vmem:[%s1 + $0xc] sm:$0xf]
    %v26 = vld [vmem:[%s1 + $0x10] sm:$0xf]
    %v27 = vld [vmem:[%s1 + $0x14] sm:$0xf]
    %v28 = vld [vmem:[%s1 + $0x18] sm:$0xf]
    %v29 = vld [vmem:[%s1 + $0x1c] sm:$0xf]
    %v30 = vld [vmem:[%s2] sm:$0x1]
    %v32 = vperm.slane %v30, 0
    %v42 = vunpack.c.l.b16 %v22
    %v43 = vunpack.c.l.b16 %v23
    %v44 = vunpack.c.l.b16 %v24
    %v45 = vunpack.c.l.b16 %v25
    %v46 = vunpack.c.l.b16 %v26
    %v47 = vunpack.c.l.b16 %v27
    %v48 = vunpack.c.l.b16 %v28
    %v49 = vunpack.c.l.b16 %v29
    %v50 = vpack.c.b16 %v43, %v42
    %v51 = vpack.c.b16 %v45, %v44
    %v52 = vpack.c.b16 %v47, %v46
    %v53 = vpack.c.b16 %v49, %v48
    %vm58 = vcmask 523264
    %v60 = vsel %vm58, %v20, 0
    %v63 = vsel %vm58, %v21, 0
    %65 = vmatpush.bf16.msra.mxu0 0
    %66 = vmatpush.bf16.msra.mxu0 0
    %67 = vmatpush.bf16.msra.mxu0 0
    %68 = vmatpush.bf16.msra.mxu0 0
    %69 = vmatpush.bf16.msra.mxu0 %v53
    %70 = vmatpush.bf16.msra.mxu0 %v52
    %71 = vmatpush.bf16.msra.mxu0 %v51
    %72 = vmatpush.bf16.msra.mxu0 %v50
    %73 = vmatmul.bf16.gmra.mxu0 %v60
    %v74 = vpop.f32.mrf.mxu0
    %v75 = vadd.f32 %v32, %v74
    %v76 = vpop.f32.mrf.mxu0
    %v77 = vadd.f32 %v32, %v76
    %78 = vmatmul.bf16.gmra.mxu0 %v63
    %v79 = vpop.f32.mrf.mxu0
    %v80 = vadd.f32 %v32, %v79
    %v81 = vpop.f32.mrf.mxu0
    %v82 = vadd.f32 %v32, %v81
    %83 = vdwg.mxu0
    %vm84 = vcmask 261120
    %85 = vst.msk [vmem:[#allocation2] sm:$0xff] %vm84, %v75
    %86 = vst.msk [vmem:[#allocation2 + $0x8] sm:$0xff] %vm84, %v77
    %87 = vst.msk [vmem:[#allocation2 + $0x10] sm:$0xff] %vm84, %v80
    %88 = vst.msk [vmem:[#allocation2 + $0x18] sm:$0xff] %vm84, %v82
    // Predicated region
    $region14: #{tpu_custom_call.1} parent=1 // pred_check
      _
    $region15: #{tpu_custom_call.1} parent=1 // pred_check_branch
      %90 = sbr.rel (0) target = $region17
    $region16: #{tpu_custom_call.1} parent=1 // pred_region
      %92 = vsyncadd [#allocation3], 0
      %s93 = sshll.u32 [#allocation2], 4
      %s94 = int_to_ptr.vmem [resolvable:$true] %s93
      %s95 = sshll.u32 %s3, 4
      %s96 = int_to_ptr.hbm [resolvable:$true] %s95
      %101 = dma.vmem_to_hbm [thread:$0]  %s94, 512, %s96, [#allocation3], 128, 128, 8
    $region17: #{tpu_custom_call.1} parent=1 // pred_fallthru
      _
    // Predicated region
    $region18: #{tpu_custom_call.1} parent=1 // pred_check
      _
    $region19: #{tpu_custom_call.1} parent=1 // pred_check_branch
      %103 = sbr.rel (0) target = $region21
    $region20: #{tpu_custom_call.1} parent=1 // pred_region
      %105 = dma.done [#allocation3], 512
    $region21: #{tpu_custom_call.1} parent=1 // pred_fallthru
      _
    %106 = vsyncpa [#allocation3], 1

</llo_original>
